<compile_context>
chip_gen: v6e
topology: v6e:2x2x1
jax: 0.10.0
libtpu: 0.0.40
codegen_flags: <defaults>
</compile_context>

<pallas_src>
import jax
import jax.numpy as jnp
from jax.experimental import pallas as pl
from jax.experimental.pallas import tpu as pltpu

LANE = 128
SUBLANE = 8
TMB_MAX = 512  # sublane-rows per tile; 512*128 rows * 3 ch * 4 B = 768 KiB/buf


def fused_mix_kernel(a_ref, b_ref, s_ref, o_ref):
    """3x3 channel mix + bias on one M-tile (rows folded on (sublane, lane)).

    a_ref : SMEM [O*C]          fused channel-mixing matrix, row-major
    b_ref : SMEM [O]            fused bias
    s_ref : VMEM [C, TMB, 128]  W-contracted input, rows m on (sublane, lane)
    o_ref : VMEM [O, TMB, 128]  lane-dense output
    """
    C = s_ref.shape[0]
    O = o_ref.shape[0]

    # Hoist all SMEM scalar reads / splats out of the FMA loops (no CSE in JAX).
    a = [[a_ref[o * C + c] for c in range(C)] for o in range(O)]
    b = [b_ref[o] for o in range(O)]
    s = [s_ref[c] for c in range(C)]

    # out[o] = sum_c A[o,c] * s[c] + b[o]   -- 9 scalar*vector FMAs on full vregs.
    for o in range(O):
        acc = a[o][0] * s[0]
        for c in range(1, C):
            acc = acc + a[o][c] * s[c]
        o_ref[o] = acc + b[o]


def fuse_params(params):
    """Fold the 5 affine layers into (v[5], A_flat[9], b_fused[3])."""
    (wc1, bc1), (wc2, bc2), (wl3, bl3), (wl4, bl4), (wl5, bl5) = params
    # Conv chain (1x1 convs == channel mixing): Y2 = A @ X + bA (broadcast over W)
    A = wc2 @ wc1                               # [3, 3]
    bA = wc2 @ bc1 + bc2                        # [3]
    # Linear chain over the last dim: Z = Y2 @ v^T + b_lin
    v = (wl5 @ wl4 @ wl3).reshape(-1)           # [5]
    b_lin = (wl5 @ (wl4 @ bl3 + bl4) + bl5)[0]  # scalar
    # out = A @ (X @ v^T) + bA * sum(v) + b_lin
    b_fused = bA * jnp.sum(v) + b_lin           # [3]
    return v, A.reshape(-1), b_fused


@jax.jit
def model_forward(x_nchw, params):
    """x_nchw: [N, 3, H, 5] float32 -> [N, 3, H, 1] float32 (PyTorch semantics)."""
    N, C, H, W = x_nchw.shape
    M = N * H
    O = 3  # final channel dim (conv output channels)

    v, a_flat, b_fused = fuse_params(params)

    # Pre-pass (one XLA fusion over the input): contract the contiguous last
    # dim with v (5 -> 1), then lay rows m = n*H + h out lane-dense as
    # [C, M] -> [C, G_pad, 128].  The kernel then only streams the 5x-smaller
    # contracted tensor from HBM.
    s_nch = jnp.einsum('nchw,w->nch', x_nchw, v)            # [N, C, H]
    s_cm = jnp.transpose(s_nch, (1, 0, 2)).reshape(C, M)    # [C, M]

    G = pl.cdiv(M, LANE)                                    # rows-of-128 needed
    G8 = ((G + SUBLANE - 1) // SUBLANE) * SUBLANE           # (8,128) min tile
    TMB = min(TMB_MAX, G8)                                  # sublane-rows / tile
    G_pad = ((G8 + TMB - 1) // TMB) * TMB                   # grid-divisible
    M_pad = G_pad * LANE

    s_cm = jnp.pad(s_cm, ((0, 0), (0, M_pad - M)))
    s_blk = s_cm.reshape(C, G_pad, LANE)

    smem_spec = pl.BlockSpec(memory_space=pltpu.MemorySpace.SMEM)

    cost = pl.CostEstimate(
        flops=18 * M_pad,                     # 9 FMAs + 3 bias adds per row
        transcendentals=0,
        bytes_accessed=(C + O) * 4 * M_pad,   # 3 f32 in + 3 f32 out per row
    )

    out = pl.pallas_call(
        fused_mix_kernel,
        grid=(G_pad // TMB,),
        in_specs=[
            smem_spec,  # A (flattened)
            smem_spec,  # fused bias
            pl.BlockSpec((C, TMB, LANE), lambda i: (0, i, 0)),
        ],
        out_specs=pl.BlockSpec((O, TMB, LANE), lambda i: (0, i, 0)),
        out_shape=jax.ShapeDtypeStruct((O, G_pad, LANE), jnp.float32),
        compiler_params=pltpu.CompilerParams(
            dimension_semantics=("parallel",)),
        cost_estimate=cost,
    )(a_flat, b_fused, s_blk)

    # [O, G_pad, 128] -> [O, M] -> [O, N, H] -> NCHW [N, O, H, 1]
    out = out.reshape(O, M_pad)[:, :M].reshape(O, N, H)
    return jnp.transpose(out, (1, 0, 2))[..., None]


def init_params(key):
    """Deterministic synthetic parameters with PyTorch-equivalent shapes.
    Conv2d(3,3,1) weight [3,3,1,1] stored squeezed as [out,in]=[3,3];
    Linear weight is [out,in] as in PyTorch."""
    ks = jax.random.split(key, 10)
    s = 0.1
    wc1 = s * jax.random.normal(ks[0], (3, 3), jnp.float32)
    bc1 = s * jax.random.normal(ks[1], (3,), jnp.float32)
    wc2 = s * jax.random.normal(ks[2], (3, 3), jnp.float32)
    bc2 = s * jax.random.normal(ks[3], (3,), jnp.float32)
    wl3 = s * jax.random.normal(ks[4], (5, 5), jnp.float32)
    bl3 = s * jax.random.normal(ks[5], (5,), jnp.float32)
    wl4 = s * jax.random.normal(ks[6], (3, 5), jnp.float32)
    bl4 = s * jax.random.normal(ks[7], (3,), jnp.float32)
    wl5 = s * jax.random.normal(ks[8], (1, 3), jnp.float32)
    bl5 = s * jax.random.normal(ks[9], (1,), jnp.float32)
    return (wc1, bc1), (wc2, bc2), (wl3, bl3), (wl4, bl4), (wl5, bl5)


def reference(x_nchw, params):
    """Pure-JAX layer-by-layer reference mirroring the PyTorch forward."""
    (wc1, bc1), (wc2, bc2), (wl3, bl3), (wl4, bl4), (wl5, bl5) = params
    h = jnp.einsum('oc,nchw->nohw', wc1, x_nchw) + bc1[None, :, None, None]
    h = jnp.einsum('oc,nchw->nohw', wc2, h) + bc2[None, :, None, None]
    h = jnp.einsum('nchw,ow->ncho', h, wl3) + bl3
    h = jnp.einsum('nchw,ow->ncho', h, wl4) + bl4
    h = jnp.einsum('nchw,ow->ncho', h, wl5) + bl5
    return h


if __name__ == "__main__":
    key = jax.random.PRNGKey(0)
    k_x, k_p = jax.random.split(key)

    # NCHW input: N=2, C=3 (Conv2d(3,3,1)), H=8, W=5 (Linear(5,5))
    x = jax.random.normal(k_x, (2, 3, 8, 5), jnp.float32)
    params = init_params(k_p)

    out = model_forward(x, params)
    out = jax.block_until_ready(out)

    ref = reference(x, params)
    assert out.shape == (2, 3, 8, 1), out.shape
    assert jnp.allclose(out, ref, atol=1e-5, rtol=1e-5), "mismatch vs reference"

    print("KERNEL_OK")
</pallas_src>

<mosaic_0001>
module attributes {stable_mosaic.version = 11 : i64} {
  func.func @fused_mix_kernel(%arg0: i32, %arg1: memref<9xf32, #tpu.memory_space<smem>>, %arg2: memref<3xf32, #tpu.memory_space<smem>>, %arg3: memref<3x8x128xf32, #tpu.memory_space<vmem>>, %arg4: memref<3x8x128xf32, #tpu.memory_space<vmem>>) attributes {dimension_semantics = [#tpu.dimension_semantics<parallel>], iteration_bounds = array<i64: 1>, scalar_prefetch = 0 : i64, scratch_operands = 0 : i64, tpu.core_type = #tpu.core_type<tc>, window_params = [{transform_indices = @transform_0, window_bounds = array<i64: 9>}, {transform_indices = @transform_1, window_bounds = array<i64: 3>}, {transform_indices = @transform_2, window_bounds = array<i64: 3, 8, 128>}, {transform_indices = @transform_3, window_bounds = array<i64: 3, 8, 128>}]} {
    %c0 = arith.constant 0 : index
    %0 = memref.load %arg1[%c0] : memref<9xf32, #tpu.memory_space<smem>>
    %c1 = arith.constant 1 : index
    %1 = memref.load %arg1[%c1] : memref<9xf32, #tpu.memory_space<smem>>
    %c2 = arith.constant 2 : index
    %2 = memref.load %arg1[%c2] : memref<9xf32, #tpu.memory_space<smem>>
    %c3 = arith.constant 3 : index
    %3 = memref.load %arg1[%c3] : memref<9xf32, #tpu.memory_space<smem>>
    %c4 = arith.constant 4 : index
    %4 = memref.load %arg1[%c4] : memref<9xf32, #tpu.memory_space<smem>>
    %c5 = arith.constant 5 : index
    %5 = memref.load %arg1[%c5] : memref<9xf32, #tpu.memory_space<smem>>
    %c6 = arith.constant 6 : index
    %6 = memref.load %arg1[%c6] : memref<9xf32, #tpu.memory_space<smem>>
    %c7 = arith.constant 7 : index
    %7 = memref.load %arg1[%c7] : memref<9xf32, #tpu.memory_space<smem>>
    %c8 = arith.constant 8 : index
    %8 = memref.load %arg1[%c8] : memref<9xf32, #tpu.memory_space<smem>>
    %c0_0 = arith.constant 0 : index
    %9 = memref.load %arg2[%c0_0] : memref<3xf32, #tpu.memory_space<smem>>
    %c1_1 = arith.constant 1 : index
    %10 = memref.load %arg2[%c1_1] : memref<3xf32, #tpu.memory_space<smem>>
    %c2_2 = arith.constant 2 : index
    %11 = memref.load %arg2[%c2_2] : memref<3xf32, #tpu.memory_space<smem>>
    %c0_3 = arith.constant 0 : index
    %c0_4 = arith.constant 0 : index
    %c0_5 = arith.constant 0 : index
    %12 = vector.load %arg3[%c0_3, %c0_4, %c0_5] : memref<3x8x128xf32, #tpu.memory_space<vmem>>, vector<1x8x128xf32>
    %13 = vector.shape_cast %12 : vector<1x8x128xf32> to vector<8x128xf32>
    %c1_6 = arith.constant 1 : index
    %c0_7 = arith.constant 0 : index
    %c0_8 = arith.constant 0 : index
    %14 = vector.load %arg3[%c1_6, %c0_7, %c0_8] : memref<3x8x128xf32, #tpu.memory_space<vmem>>, vector<1x8x128xf32>
    %15 = vector.shape_cast %14 : vector<1x8x128xf32> to vector<8x128xf32>
    %c2_9 = arith.constant 2 : index
    %c0_10 = arith.constant 0 : index
    %c0_11 = arith.constant 0 : index
    %16 = vector.load %arg3[%c2_9, %c0_10, %c0_11] : memref<3x8x128xf32, #tpu.memory_space<vmem>>, vector<1x8x128xf32>
    %17 = vector.shape_cast %16 : vector<1x8x128xf32> to vector<8x128xf32>
    %18 = vector.broadcast %0 : f32 to vector<8x128xf32>
    %19 = arith.mulf %18, %13 : vector<8x128xf32>
    %20 = vector.broadcast %1 : f32 to vector<8x128xf32>
    %21 = arith.mulf %20, %15 : vector<8x128xf32>
    %22 = arith.addf %19, %21 : vector<8x128xf32>
    %23 = vector.broadcast %2 : f32 to vector<8x128xf32>
    %24 = arith.mulf %23, %17 : vector<8x128xf32>
    %25 = arith.addf %22, %24 : vector<8x128xf32>
    %26 = vector.broadcast %9 : f32 to vector<8x128xf32>
    %27 = arith.addf %25, %26 : vector<8x128xf32>
    %c0_12 = arith.constant 0 : index
    %c0_13 = arith.constant 0 : index
    %c0_14 = arith.constant 0 : index
    %28 = vector.load %arg4[%c0_12, %c0_13, %c0_14] : memref<3x8x128xf32, #tpu.memory_space<vmem>>, vector<1x8x128xf32>
    %29 = vector.shape_cast %28 : vector<1x8x128xf32> to vector<8x128xf32>
    %30 = vector.shape_cast %27 : vector<8x128xf32> to vector<1x8x128xf32>
    tpu.vector_store %arg4[%c0_12, %c0_13, %c0_14], %30 {strides = array<i32>} : memref<3x8x128xf32, #tpu.memory_space<vmem>>, vector<1x8x128xf32>,
    %31 = vector.broadcast %3 : f32 to vector<8x128xf32>
    %32 = arith.mulf %31, %13 : vector<8x128xf32>
    %33 = vector.broadcast %4 : f32 to vector<8x128xf32>
    %34 = arith.mulf %33, %15 : vector<8x128xf32>
    %35 = arith.addf %32, %34 : vector<8x128xf32>
    %36 = vector.broadcast %5 : f32 to vector<8x128xf32>
    %37 = arith.mulf %36, %17 : vector<8x128xf32>
    %38 = arith.addf %35, %37 : vector<8x128xf32>
    %39 = vector.broadcast %10 : f32 to vector<8x128xf32>
    %40 = arith.addf %38, %39 : vector<8x128xf32>
    %c1_15 = arith.constant 1 : index
    %c0_16 = arith.constant 0 : index
    %c0_17 = arith.constant 0 : index
    %41 = vector.load %arg4[%c1_15, %c0_16, %c0_17] : memref<3x8x128xf32, #tpu.memory_space<vmem>>, vector<1x8x128xf32>
    %42 = vector.shape_cast %41 : vector<1x8x128xf32> to vector<8x128xf32>
    %43 = vector.shape_cast %40 : vector<8x128xf32> to vector<1x8x128xf32>
    tpu.vector_store %arg4[%c1_15, %c0_16, %c0_17], %43 {strides = array<i32>} : memref<3x8x128xf32, #tpu.memory_space<vmem>>, vector<1x8x128xf32>,
    %44 = vector.broadcast %6 : f32 to vector<8x128xf32>
    %45 = arith.mulf %44, %13 : vector<8x128xf32>
    %46 = vector.broadcast %7 : f32 to vector<8x128xf32>
    %47 = arith.mulf %46, %15 : vector<8x128xf32>
    %48 = arith.addf %45, %47 : vector<8x128xf32>
    %49 = vector.broadcast %8 : f32 to vector<8x128xf32>
    %50 = arith.mulf %49, %17 : vector<8x128xf32>
    %51 = arith.addf %48, %50 : vector<8x128xf32>
    %52 = vector.broadcast %11 : f32 to vector<8x128xf32>
    %53 = arith.addf %51, %52 : vector<8x128xf32>
    %c2_18 = arith.constant 2 : index
    %c0_19 = arith.constant 0 : index
    %c0_20 = arith.constant 0 : index
    %54 = vector.load %arg4[%c2_18, %c0_19, %c0_20] : memref<3x8x128xf32, #tpu.memory_space<vmem>>, vector<1x8x128xf32>
    %55 = vector.shape_cast %54 : vector<1x8x128xf32> to vector<8x128xf32>
    %56 = vector.shape_cast %53 : vector<8x128xf32> to vector<1x8x128xf32>
    tpu.vector_store %arg4[%c2_18, %c0_19, %c0_20], %56 {strides = array<i32>} : memref<3x8x128xf32, #tpu.memory_space<vmem>>, vector<1x8x128xf32>,
    return
  }
  func.func @transform_0(%arg0: i32) -> i32 {
    %c0_i32 = arith.constant 0 : i32
    %c0_i32_0 = arith.constant 0 : i32
    return %c0_i32 : i32
  }
  func.func @transform_1(%arg0: i32) -> i32 {
    %c0_i32 = arith.constant 0 : i32
    %c0_i32_0 = arith.constant 0 : i32
    return %c0_i32 : i32
  }
  func.func @transform_2(%arg0: i32) -> (i32, i32, i32) {
    %c0_i32 = arith.constant 0 : i32
    %c0_i32_0 = arith.constant 0 : i32
    %c0_i32_1 = arith.constant 0 : i32
    return %c0_i32, %arg0, %c0_i32_0 : i32, i32, i32
  }
  func.func @transform_3(%arg0: i32) -> (i32, i32, i32) {
    %c0_i32 = arith.constant 0 : i32
    %c0_i32_0 = arith.constant 0 : i32
    %c0_i32_1 = arith.constant 0 : i32
    return %c0_i32, %arg0, %c0_i32_0 : i32, i32, i32
  }
}

</mosaic_0001>

<llo_original>
// kernel: model_forward.1
$region0: #{model_forward.1}
  #allocation0 [shape = 'u32[]', space=smem, size = 0x4, offset = 0x4, fixed_abs, tag = 'smem constant byte address 0x4 - core index']
  #allocation1 [shape = 'u32[144,128]{1,0:T(1,128)}', space=vmem, size = 0x12000, scoped, tag = 'internal scratch']
  %s0 = inlined_call_operand.vmem [shape: f32[9], index: 0, kind: input, shape index: {}]
  %s1 = inlined_call_operand.vmem [shape: f32[3], index: 1, kind: input, shape index: {}]
  %s2 = inlined_call_operand.vmem [shape: f32[3,8,128], index: 2, kind: input, shape index: {}]
  %s3 = inlined_call_operand.vmem [shape: f32[3,8,128], index: 3, kind: output, shape index: {}]
  %s4 = sld [smem:[#allocation0]]
  $region30: #{model_forward.1} parent=0
    _
  %s6 = ssub.s32 1, %s4
  %s7 = scalar_select 0, %s6, %s4
  $region1: #{model_forward.1} parent=0
    #allocation2 [shape = 'u8[512]{0}', space=smem, size = 0x200, scoped, tag = 'input window, operand 0, single buffered']
    #allocation3 [shape = 's32[1]{0}', space=sflag, size = 0x4, scoped, tag = 'scoped memory for model_forward.1']
    #allocation4 [shape = 'u8[512]{0}', space=smem, size = 0x200, scoped, tag = 'input window, operand 1, single buffered']
    #allocation5 [shape = 's32[1]{0}', space=sflag, size = 0x4, scoped, tag = 'scoped memory for model_forward.1']
    %8 = vsyncpa [#allocation3], 0
    %9 = vsyncpa [#allocation5], 0
    // Predicated region
    $region2: #{model_forward.1} parent=1 // pred_check
      _
    $region3: #{model_forward.1} parent=1 // pred_check_branch
      %11 = sbr.rel (0) target = $region5
    $region4: #{model_forward.1} parent=1 // pred_region
      %s13 = ssub.s32 16, 16
      %14 = vsyncadd [#allocation3], %s13
      %s16 = sshll.u32 %s0, 4
      %s17 = int_to_ptr.vmem [resolvable:$true] %s16
      %19 = dma.vmem_to_smem %s17, 16, [#allocation2], [#allocation3]
    $region5: #{model_forward.1} parent=1 // pred_fallthru
      _
    // Predicated region
    $region6: #{model_forward.1} parent=1 // pred_check
      _
    $region7: #{model_forward.1} parent=1 // pred_check_branch
      %21 = sbr.rel (0) target = $region9
    $region8: #{model_forward.1} parent=1 // pred_region
      %s23 = ssub.s32 16, 16
      %24 = vsyncadd [#allocation5], %s23
      %s26 = sshll.u32 %s1, 4
      %s27 = int_to_ptr.vmem [resolvable:$true] %s26
      %29 = dma.vmem_to_smem %s27, 16, [#allocation4], [#allocation5]
    $region9: #{model_forward.1} parent=1 // pred_fallthru
      _
    // Predicated region
    $region10: #{model_forward.1} parent=1 // pred_check
      _
    $region11: #{model_forward.1} parent=1 // pred_check_branch
      %31 = sbr.rel (0) target = $region13
    $region12: #{model_forward.1} parent=1 // pred_region
      _
    $region13: #{model_forward.1} parent=1 // pred_fallthru
      _
    // Predicated region
    $region14: #{model_forward.1} parent=1 // pred_check
      _
    $region15: #{model_forward.1} parent=1 // pred_check_branch
      %33 = sbr.rel (0) target = $region17
    $region16: #{model_forward.1} parent=1 // pred_region
      %34 = dma.done [#allocation3], 16
    $region17: #{model_forward.1} parent=1 // pred_fallthru
      _
    // Predicated region
    $region18: #{model_forward.1} parent=1 // pred_check
      _
    $region19: #{model_forward.1} parent=1 // pred_check_branch
      %36 = sbr.rel (0) target = $region21
    $region20: #{model_forward.1} parent=1 // pred_region
      %37 = dma.done [#allocation5], 16
    $region21: #{model_forward.1} parent=1 // pred_fallthru
      _
    %38 = sfence
    %s39 = sld [smem:[#allocation2]]
    %s40 = sld [smem:[#allocation2 + $0x1]]
    %s41 = sld [smem:[#allocation2 + $0x2]]
    %s42 = sld [smem:[#allocation2 + $0x3]]
    %s43 = sld [smem:[#allocation2 + $0x4]]
    %s44 = sld [smem:[#allocation2 + $0x5]]
    %s45 = sld [smem:[#allocation2 + $0x6]]
    %s46 = sld [smem:[#allocation2 + $0x7]]
    %s47 = sld [smem:[#allocation2 + $0x8]]
    %s48 = sld [smem:[#allocation4]]
    %s49 = sld [smem:[#allocation4 + $0x1]]
    %s50 = sld [smem:[#allocation4 + $0x2]]
    %v51 = vld [vmem:[%s2] sm:$0xff]
    %s52 = scalar_lea.vmem %s2, 8
    %v53 = vld [vmem:[%s52] sm:$0xff]
    %s54 = scalar_lea.vmem %s2, 16
    %v55 = vld [vmem:[%s54] sm:$0xff]
    %v56 = vstv %s39
    %v57 = vmul.f32 %v56, %v51
    %v58 = vstv %s40
    %v59 = vmul.f32 %v58, %v53
    %v60 = vadd.f32 %v57, %v59
    %v61 = vstv %s41
    %v62 = vmul.f32 %v61, %v55
    %v63 = vadd.f32 %v60, %v62
    %v64 = vstv %s48
    %v65 = vadd.f32 %v63, %v64
    %66 = vst [vmem:[%s3] sm:$0xff] %v65
    %v67 = vstv %s42
    %v68 = vmul.f32 %v67, %v51
    %v69 = vstv %s43
    %v70 = vmul.f32 %v69, %v53
    %v71 = vadd.f32 %v68, %v70
    %v72 = vstv %s44
    %v73 = vmul.f32 %v72, %v55
    %v74 = vadd.f32 %v71, %v73
    %v75 = vstv %s49
    %v76 = vadd.f32 %v74, %v75
    %s77 = scalar_lea.vmem %s3, 8
    %78 = vst [vmem:[%s77] sm:$0xff] %v76
    %v79 = vstv %s45
    %v80 = vmul.f32 %v79, %v51
    %v81 = vstv %s46
    %v82 = vmul.f32 %v81, %v53
    %v83 = vadd.f32 %v80, %v82
    %v84 = vstv %s47
    %v85 = vmul.f32 %v84, %v55
    %v86 = vadd.f32 %v83, %v85
    %v87 = vstv %s50
    %v88 = vadd.f32 %v86, %v87
    %s89 = scalar_lea.vmem %s3, 16
    %90 = vst [vmem:[%s89] sm:$0xff] %v88
    // Predicated region
    $region22: #{model_forward.1} parent=1 // pred_check
      _
    $region23: #{model_forward.1} parent=1 // pred_check_branch
      %92 = sbr.rel (0) target = $region25
    $region24: #{model_forward.1} parent=1 // pred_region
      _
    $region25: #{model_forward.1} parent=1 // pred_fallthru
      _
    // Predicated region
    $region26: #{model_forward.1} parent=1 // pred_check
      _
    $region27: #{model_forward.1} parent=1 // pred_check_branch
      %94 = sbr.rel (0) target = $region29
    $region28: #{model_forward.1} parent=1 // pred_region
      _
    $region29: #{model_forward.1} parent=1 // pred_fallthru
      _
    %95 = vsyncpa [#allocation3], 1
    %96 = vsyncpa [#allocation5], 1

</llo_original>
